<compile_context>
chip_gen: v7x
topology: tpu7x:2x2x1
jax: 0.10.0
libtpu: 0.0.40
codegen_flags: <defaults>
</compile_context>

<pallas_src>
import functools
import math

import jax
import jax.numpy as jnp
from jax.experimental import pallas as pl
from jax.experimental.pallas import tpu as pltpu

_LANE = 128
_SUBLANE = 8


def _round_up(x, m):
    return ((x + m - 1) // m) * m


def _round_down_pos(x, m):
    return max(m, (x // m) * m)


def _vmem_budget():
    """Returns (scoped-vmem limit to request, per-buffer-set tile byte budget)."""
    try:
        cap = int(pltpu.get_tpu_info().vmem_capacity_bytes)
    except Exception:
        cap = 64 * 1024 * 1024          # conservative: v7x physical VMEM
    limit = min(cap // 2, 64 * 1024 * 1024)
    return limit, limit // 4            # x2 double-buffering + headroom


def _pick_lane_tile(n, rows, itemsize, tile_budget, other_steps):
    """Largest lane tile (multiple of 128, or full extent) under the VMEM
    budget; keep >=2 total grid steps so both v7x TensorCores get work."""
    if n <= _LANE:
        return n
    max_tn = max(_LANE, tile_budget // max(1, rows * itemsize))
    tn = min(_round_down_pos(max_tn, _LANE), _round_up(n, _LANE))
    if other_steps * pl.cdiv(n, tn) < 2:
        tn = _round_up(pl.cdiv(n, 2), _LANE)
    return tn


def _pick_time_tile(T, rows, V, itemsize, tile_budget, other_steps):
    """Sublane (time) tile, multiple of 8 so (C,tT,V)<->(C*tT,V) reshapes are
    layout-free."""
    v_pad = _round_up(V, _LANE)
    max_tt = max(_SUBLANE, tile_budget // max(1, rows * v_pad * itemsize))
    tt = min(_round_down_pos(max_tt, _SUBLANE), _round_up(T, _SUBLANE))
    if other_steps * pl.cdiv(T, tt) < 2 and T > _SUBLANE:
        tt = _round_up(pl.cdiv(T, 2), _SUBLANE)
    return tt


# -----------------------------------------------------------------------------
# Align: 1x1 Conv2d on NCHW.  Channels in sublanes, T*V lane-dense.
# -----------------------------------------------------------------------------
def _align_conv_kernel(w_ref, b_ref, x_ref, o_ref):
    # w: (C_out, C_in)  b: (C_out, 1)  x: (1, C_in, tn)  o: (1, C_out, tn)
    acc = jnp.dot(w_ref[...], x_ref[0], preferred_element_type=jnp.float32)
    o_ref[0] = (acc + b_ref[...]).astype(o_ref.dtype)


def align_conv1x1(x, weight, bias):
    """x: (B, C_in, T, V), weight: (C_out, C_in, 1, 1), bias: (C_out,)."""
    B, C_in, T, V = x.shape
    C_out = weight.shape[0]
    N = T * V
    xf = x.reshape(B, C_in, N)                   # free row-major view
    w = weight.reshape(C_out, C_in)
    b = bias.reshape(C_out, 1)

    limit, tile_budget = _vmem_budget()
    tn = _pick_lane_tile(N, C_in + C_out, x.dtype.itemsize, tile_budget, B)
    grid = (B, pl.cdiv(N, tn))

    out = pl.pallas_call(
        _align_conv_kernel,
        out_shape=jax.ShapeDtypeStruct((B, C_out, N), x.dtype),
        grid_spec=pltpu.PrefetchScalarGridSpec(
            num_scalar_prefetch=0,
            grid=grid,
            in_specs=[
                pl.BlockSpec((C_out, C_in), lambda bi, ni: (0, 0)),
                pl.BlockSpec((C_out, 1), lambda bi, ni: (0, 0)),
                pl.BlockSpec((1, C_in, tn), lambda bi, ni: (bi, 0, ni)),
            ],
            out_specs=pl.BlockSpec((1, C_out, tn), lambda bi, ni: (bi, 0, ni)),
        ),
        compiler_params=pltpu.CompilerParams(
            dimension_semantics=("parallel", "parallel"),
            vmem_limit_bytes=limit),
        cost_estimate=pl.CostEstimate(
            flops=2 * B * N * C_in * C_out,
            transcendentals=0,
            bytes_accessed=4 * (B * N * (C_in + C_out) + C_in * C_out + C_out)),
    )(w, b, xf)
    return out.reshape(B, C_out, T, V)


# -----------------------------------------------------------------------------
# Fused vertex-mixing recurrence: one pass emits T_1..T_{n_terms}
#   T_1 = gso . x   (over the vertex dim),   T_{k+1} = 2*gso.T_k - T_{k-1}
# Output stacked along channels: (B, n_terms*C, T, V)  (lane-dense downstream).
# -----------------------------------------------------------------------------
def _graph_terms_kernel(gso_t_ref, x_ref, o_ref, *, n_terms):
    # gso_t: (V, V)   x: (1, C, tT, V)   o: (1, n_terms, C, tT, V)
    _, C, tT, V = x_ref.shape
    gso_t = gso_t_ref[...]
    # tT % 8 == 0  ->  layout-free sublane relabel
    x2 = x_ref[0].reshape(C * tT, V).astype(jnp.float32)
    t1 = jnp.dot(x2, gso_t, preferred_element_type=jnp.float32)
    o_ref[0, 0] = t1.astype(o_ref.dtype).reshape(C, tT, V)
    t_prev2, t_prev1 = x2, t1
    for k in range(1, n_terms):
        t_cur = 2.0 * jnp.dot(t_prev1, gso_t,
                              preferred_element_type=jnp.float32) - t_prev2
        o_ref[0, k] = t_cur.astype(o_ref.dtype).reshape(C, tT, V)
        t_prev2, t_prev1 = t_prev1, t_cur


def graph_mix_terms(x, gso, n_terms):
    B, C, T, V = x.shape
    gso_t = jnp.swapaxes(gso, 0, 1)              # tiny; standard matmul orientation
    limit, tile_budget = _vmem_budget()
    rows = (1 + n_terms) * C                     # x block + stacked output block
    tT = _pick_time_tile(T, rows, V, x.dtype.itemsize, tile_budget, B)
    grid = (B, pl.cdiv(T, tT))

    out = pl.pallas_call(
        functools.partial(_graph_terms_kernel, n_terms=n_terms),
        out_shape=jax.ShapeDtypeStruct((B, n_terms, C, T, V), x.dtype),
        grid_spec=pltpu.PrefetchScalarGridSpec(
            num_scalar_prefetch=0,
            grid=grid,
            in_specs=[
                pl.BlockSpec((V, V), lambda bi, ti: (0, 0)),
                pl.BlockSpec((1, C, tT, V), lambda bi, ti: (bi, 0, ti, 0)),
            ],
            out_specs=pl.BlockSpec((1, n_terms, C, tT, V),
                                   lambda bi, ti: (bi, 0, 0, ti, 0)),
        ),
        compiler_params=pltpu.CompilerParams(
            dimension_semantics=("parallel", "parallel"),
            vmem_limit_bytes=limit),
        cost_estimate=pl.CostEstimate(
            flops=2 * n_terms * B * C * T * V * V,
            transcendentals=0,
            bytes_accessed=4 * (B * C * T * V * (1 + n_terms) + V * V)),
    )(gso_t, x)
    return out.reshape(B, n_terms * C, T, V)     # free row-major view


# -----------------------------------------------------------------------------
# Fused channel contraction + bias + permute-back + residual, lane-dense.
#   out[b,j,t,v] = (wx @ x_al)[j,tv] + (wm @ mixed)[j,tv] + bias[j] + x_al[b,j,t,v]
# x_al is read once (W_0 term AND residual share one ref / one DMA stream).
# -----------------------------------------------------------------------------
def _contract_kernel(*refs, with_x_dot, with_mixed):
    idx = 0
    if with_x_dot:
        wx_ref = refs[idx]; idx += 1
    if with_mixed:
        wm_ref = refs[idx]; idx += 1
    b_ref = refs[idx]; idx += 1
    x_ref = refs[idx]; idx += 1
    if with_mixed:
        m_ref = refs[idx]; idx += 1
    o_ref = refs[idx]

    if with_mixed:
        acc = jnp.dot(wm_ref[...], m_ref[0], preferred_element_type=jnp.float32)
        if with_x_dot:
            acc = acc + jnp.dot(wx_ref[...], x_ref[0],
                                preferred_element_type=jnp.float32)
    else:
        acc = jnp.dot(wx_ref[...], x_ref[0], preferred_element_type=jnp.float32)
    o_ref[0] = (acc + b_ref[...] + x_ref[0].astype(jnp.float32)).astype(o_ref.dtype)


def fused_contract(x_al, *, wx=None, wm=None, mixed=None, bias=None):
    assert (wm is None) == (mixed is None)
    B, C, T, V = x_al.shape
    N = T * V
    C_out = wx.shape[0] if wx is not None else wm.shape[0]
    assert C_out == C                            # residual add requires match
    xf = x_al.reshape(B, C, N)                   # free row-major view
    b = (bias if bias is not None
         else jnp.zeros((C_out,), x_al.dtype)).reshape(C_out, 1)
    kc = mixed.shape[1] if mixed is not None else 0

    limit, tile_budget = _vmem_budget()
    rows = C + kc + C_out
    tn = _pick_lane_tile(N, rows, x_al.dtype.itemsize, tile_budget, B)
    grid = (B, pl.cdiv(N, tn))

    in_specs, args = [], []
    if wx is not None:
        in_specs.append(pl.BlockSpec((C_out, C), lambda bi, ni: (0, 0)))
        args.append(wx)
    if mixed is not None:
        in_specs.append(pl.BlockSpec((C_out, kc), lambda bi, ni: (0, 0)))
        args.append(wm)
    in_specs.append(pl.BlockSpec((C_out, 1), lambda bi, ni: (0, 0)))
    args.append(b)
    in_specs.append(pl.BlockSpec((1, C, tn), lambda bi, ni: (bi, 0, ni)))
    args.append(xf)
    if mixed is not None:
        in_specs.append(pl.BlockSpec((1, kc, tn), lambda bi, ni: (bi, 0, ni)))
        args.append(mixed.reshape(B, kc, N))

    flops = 2 * B * N * C_out * ((C if wx is not None else 0) + kc)
    bytes_accessed = 4 * (B * N * (C + kc + C_out) + C_out * (C + kc) + C_out)

    out = pl.pallas_call(
        functools.partial(_contract_kernel,
                          with_x_dot=wx is not None,
                          with_mixed=mixed is not None),
        out_shape=jax.ShapeDtypeStruct((B, C_out, N), x_al.dtype),
        grid_spec=pltpu.PrefetchScalarGridSpec(
            num_scalar_prefetch=0,
            grid=grid,
            in_specs=in_specs,
            out_specs=pl.BlockSpec((1, C_out, tn), lambda bi, ni: (bi, 0, ni)),
        ),
        compiler_params=pltpu.CompilerParams(
            dimension_semantics=("parallel", "parallel"),
            vmem_limit_bytes=limit),
        cost_estimate=pl.CostEstimate(
            flops=flops, transcendentals=0, bytes_accessed=bytes_accessed),
    )(*args)
    return out.reshape(B, C_out, T, V)


# -----------------------------------------------------------------------------
# Module wrapper
# -----------------------------------------------------------------------------
class GraphConvLayerPallas:
    """JAX/Pallas port of model.layers.GraphConvLayer (forward pass)."""

    def __init__(self, graph_conv_type, c_in, c_out, Ks, gso, bias, key):
        if graph_conv_type not in ("cheb_graph_conv", "graph_conv"):
            raise NotImplementedError(graph_conv_type)
        if Ks < 1:
            raise ValueError(f"Ks must be a positive integer, got {Ks}.")
        self.graph_conv_type = graph_conv_type
        self.c_in = c_in
        self.c_out = c_out
        self.Ks = Ks
        self.gso = jnp.asarray(gso, jnp.float32)

        k_aw, k_ab, k_w, k_b = jax.random.split(key, 4)

        if c_in > c_out:                         # Align params (1x1 Conv2d)
            bound = 1.0 / math.sqrt(c_in)
            self.align_weight = jax.random.uniform(
                k_aw, (c_out, c_in, 1, 1), jnp.float32, -bound, bound)
            self.align_bias = jax.random.uniform(
                k_ab, (c_out,), jnp.float32, -bound, bound)
        else:
            self.align_weight = None
            self.align_bias = None

        bound = 1.0 / math.sqrt(c_out)
        w_shape = ((Ks, c_out, c_out) if graph_conv_type == "cheb_graph_conv"
                   else (c_out, c_out))
        self.weight = jax.random.uniform(k_w, w_shape, jnp.float32, -bound, bound)
        self.bias = (jax.random.uniform(k_b, (c_out,), jnp.float32, -bound, bound)
                     if bias else None)

    def _align(self, x):
        if self.c_in > self.c_out:
            return align_conv1x1(x, self.align_weight, self.align_bias)
        elif self.c_in < self.c_out:
            # pure memory op: zero-pad channels (fused by XLA, no kernel needed)
            return jnp.pad(x, ((0, 0), (0, self.c_out - self.c_in), (0, 0), (0, 0)))
        return x

    def __call__(self, x):
        x_al = self._align(x)                                 # (B, c_out, T, V)
        C = self.c_out
        if self.graph_conv_type == "cheb_graph_conv":
            wx = jnp.swapaxes(self.weight[0], 0, 1)           # W_0^T: (C, C)
            if self.Ks > 1:
                # T_1..T_{Ks-1} in one fused pass, stacked along channels.
                mixed = graph_mix_terms(x_al, self.gso, self.Ks - 1)
                wm = jnp.swapaxes(
                    self.weight[1:].reshape((self.Ks - 1) * C, C), 0, 1)
                return fused_contract(x_al, wx=wx, wm=wm, mixed=mixed,
                                      bias=self.bias)
            return fused_contract(x_al, wx=wx, bias=self.bias)
        else:
            mixed = graph_mix_terms(x_al, self.gso, 1)        # gso . x
            wm = jnp.swapaxes(self.weight, 0, 1)              # (C, C)
            return fused_contract(x_al, wm=wm, mixed=mixed, bias=self.bias)


# -----------------------------------------------------------------------------
# Pure-JAX reference of the PyTorch forward (for validation)
# -----------------------------------------------------------------------------
def _reference_forward(layer, x):
    if layer.c_in > layer.c_out:
        w = layer.align_weight.reshape(layer.c_out, layer.c_in)
        x_al = (jnp.einsum("oc,bctv->botv", w, x)
                + layer.align_bias[None, :, None, None])
    elif layer.c_in < layer.c_out:
        x_al = jnp.pad(x, ((0, 0), (0, layer.c_out - layer.c_in), (0, 0), (0, 0)))
    else:
        x_al = x
    xp = jnp.transpose(x_al, (0, 2, 3, 1))                   # (B, T, V, C)
    if layer.graph_conv_type == "cheb_graph_conv":
        xs = [xp]
        if layer.Ks > 1:
            xs.append(jnp.einsum("hi,btij->bthj", layer.gso, xp))
        for k in range(2, layer.Ks):
            xs.append(jnp.einsum("hi,btij->bthj", 2.0 * layer.gso, xs[k - 1])
                      - xs[k - 2])
        x_stk = jnp.stack(xs, axis=2)
        gc = jnp.einsum("btkhi,kij->bthj", x_stk, layer.weight)
    else:
        fm = jnp.einsum("hi,btij->bthj", layer.gso, xp)
        gc = jnp.einsum("bthi,ij->bthj", fm, layer.weight)
    if layer.bias is not None:
        gc = gc + layer.bias
    return jnp.transpose(gc, (0, 3, 1, 2)) + x_al


if __name__ == "__main__":
    key = jax.random.PRNGKey(0)
    k_param, k_x, k_gso = jax.random.split(key, 3)

    B, T, V = 2, 16, 16
    gso = jax.random.normal(k_gso, (V, V), jnp.float32) / float(V)

    configs = [
        ("graph_conv", 8, 4, 3),        # Align = Pallas 1x1-conv kernel
        ("cheb_graph_conv", 8, 4, 3),   # + fused Chebyshev recurrence kernel
        ("cheb_graph_conv", 2, 4, 3),   # Align = channel zero-pad branch
        ("graph_conv", 4, 4, 3),        # Align = identity branch
        ("cheb_graph_conv", 4, 4, 1),   # Ks=1: contraction-only path
    ]
    for gtype, c_in, c_out, Ks in configs:
        layer = GraphConvLayerPallas(gtype, c_in, c_out, Ks, gso, bias=True,
                                     key=k_param)
        x = jax.random.normal(k_x, (B, c_in, T, V), dtype=jnp.float32)
        y = jax.block_until_ready(jax.jit(layer.__call__)(x))
        assert y.shape == (B, c_out, T, V)
        y_ref = _reference_forward(layer, x)
        assert jnp.allclose(y, y_ref, atol=1e-4, rtol=1e-4), (gtype, c_in, Ks)

    print("KERNEL_OK")
</pallas_src>

<mosaic_0001>
module attributes {stable_mosaic.version = 11 : i64} {
  func.func @_graph_terms_kernel(%arg0: i32, %arg1: i32, %arg2: memref<16x16xf32, #tpu.memory_space<vmem>>, %arg3: memref<1x4x16x16xf32, #tpu.memory_space<vmem>>, %arg4: memref<1x1x4x16x16xf32, #tpu.memory_space<vmem>>) attributes {dimension_semantics = [#tpu.dimension_semantics<parallel>, #tpu.dimension_semantics<parallel>], iteration_bounds = array<i64: 2, 1>, scalar_prefetch = 0 : i64, scratch_operands = 0 : i64, tpu.core_type = #tpu.core_type<tc>, window_params = [{pipeline_mode = #tpu.pipeline_mode<synchronous>, transform_indices = @transform_0, window_bounds = array<i64: 16, 16>}, {transform_indices = @transform_1, window_bounds = array<i64: 1, 4, 16, 16>}, {transform_indices = @transform_2, window_bounds = array<i64: 1, 1, 4, 16, 16>}]} {
    %c0 = arith.constant 0 : index
    %c0_0 = arith.constant 0 : index
    %0 = vector.load %arg2[%c0, %c0_0] : memref<16x16xf32, #tpu.memory_space<vmem>>, vector<16x16xf32>
    %c0_1 = arith.constant 0 : index
    %c0_2 = arith.constant 0 : index
    %c0_3 = arith.constant 0 : index
    %c0_4 = arith.constant 0 : index
    %1 = vector.load %arg3[%c0_1, %c0_2, %c0_3, %c0_4] : memref<1x4x16x16xf32, #tpu.memory_space<vmem>>, vector<1x4x16x16xf32>
    %2 = vector.shape_cast %1 : vector<1x4x16x16xf32> to vector<4x16x16xf32>
    %3 = vector.shape_cast %2 : vector<4x16x16xf32> to vector<64x16xf32>
    %cst = arith.constant dense<0.000000e+00> : vector<64x16xf32>
    %4 = tpu.matmul %3, %0, %cst {dimension_numbers = #tpu.dot_dimension_numbers<[1], [0], [0], [1], [0, 0, 1, 1], [], []>} : vector<64x16xf32>, vector<16x16xf32>, vector<64x16xf32> -> vector<64x16xf32>
    %5 = vector.shape_cast %4 : vector<64x16xf32> to vector<4x16x16xf32>
    %c0_5 = arith.constant 0 : index
    %c0_6 = arith.constant 0 : index
    %c0_7 = arith.constant 0 : index
    %c0_8 = arith.constant 0 : index
    %c0_9 = arith.constant 0 : index
    %6 = vector.load %arg4[%c0_5, %c0_6, %c0_7, %c0_8, %c0_9] : memref<1x1x4x16x16xf32, #tpu.memory_space<vmem>>, vector<1x1x4x16x16xf32>
    %7 = vector.shape_cast %6 : vector<1x1x4x16x16xf32> to vector<4x16x16xf32>
    %8 = vector.shape_cast %5 : vector<4x16x16xf32> to vector<1x1x4x16x16xf32>
    tpu.vector_store %arg4[%c0_5, %c0_6, %c0_7, %c0_8, %c0_9], %8 {strides = array<i32>} : memref<1x1x4x16x16xf32, #tpu.memory_space<vmem>>, vector<1x1x4x16x16xf32>,
    return
  }
  func.func @transform_0(%arg0: i32, %arg1: i32) -> (i32, i32) {
    %c0_i32 = arith.constant 0 : i32
    %c0_i32_0 = arith.constant 0 : i32
    %c0_i32_1 = arith.constant 0 : i32
    return %c0_i32, %c0_i32_0 : i32, i32
  }
  func.func @transform_1(%arg0: i32, %arg1: i32) -> (i32, i32, i32, i32) {
    %c0_i32 = arith.constant 0 : i32
    %c0_i32_0 = arith.constant 0 : i32
    %c0_i32_1 = arith.constant 0 : i32
    return %arg0, %c0_i32, %arg1, %c0_i32_0 : i32, i32, i32, i32
  }
  func.func @transform_2(%arg0: i32, %arg1: i32) -> (i32, i32, i32, i32, i32) {
    %c0_i32 = arith.constant 0 : i32
    %c0_i32_0 = arith.constant 0 : i32
    %c0_i32_1 = arith.constant 0 : i32
    %c0_i32_2 = arith.constant 0 : i32
    return %arg0, %c0_i32, %c0_i32_0, %arg1, %c0_i32_1 : i32, i32, i32, i32, i32
  }
}

module attributes {stable_mosaic.version = 11 : i64} {
  func.func @_align_conv_kernel(%arg0: i32, %arg1: i32, %arg2: memref<4x8xf32, #tpu.memory_space<vmem>>, %arg3: memref<4x1xf32, #tpu.memory_space<vmem>>, %arg4: memref<1x8x256xf32, #tpu.memory_space<vmem>>, %arg5: memref<1x4x256xf32, #tpu.memory_space<vmem>>) attributes {dimension_semantics = [#tpu.dimension_semantics<parallel>, #tpu.dimension_semantics<parallel>], iteration_bounds = array<i64: 2, 1>, scalar_prefetch = 0 : i64, scratch_operands = 0 : i64, tpu.core_type = #tpu.core_type<tc>, window_params = [{pipeline_mode = #tpu.pipeline_mode<synchronous>, transform_indices = @transform_0, window_bounds = array<i64: 4, 8>}, {pipeline_mode = #tpu.pipeline_mode<synchronous>, transform_indices = @transform_1, window_bounds = array<i64: 4, 1>}, {transform_indices = @transform_2, window_bounds = array<i64: 1, 8, 256>}, {transform_indices = @transform_3, window_bounds = array<i64: 1, 4, 256>}]} {
    %c0 = arith.constant 0 : index
    %c0_0 = arith.constant 0 : index
    %0 = vector.load %arg2[%c0, %c0_0] : memref<4x8xf32, #tpu.memory_space<vmem>>, vector<4x8xf32>
    %c0_1 = arith.constant 0 : index
    %c0_2 = arith.constant 0 : index
    %c0_3 = arith.constant 0 : index
    %1 = vector.load %arg4[%c0_1, %c0_2, %c0_3] : memref<1x8x256xf32, #tpu.memory_space<vmem>>, vector<1x8x256xf32>
    %2 = vector.shape_cast %1 : vector<1x8x256xf32> to vector<8x256xf32>
    %cst = arith.constant dense<0.000000e+00> : vector<4x256xf32>
    %3 = tpu.matmul %0, %2, %cst {dimension_numbers = #tpu.dot_dimension_numbers<[1], [0], [0], [1], [0, 0, 1, 1], [], []>} : vector<4x8xf32>, vector<8x256xf32>, vector<4x256xf32> -> vector<4x256xf32>
    %c0_4 = arith.constant 0 : index
    %c0_5 = arith.constant 0 : index
    %4 = vector.load %arg3[%c0_4, %c0_5] : memref<4x1xf32, #tpu.memory_space<vmem>>, vector<4x1xf32>
    %5 = vector.broadcast %4 : vector<4x1xf32> to vector<4x256xf32>
    %6 = arith.addf %3, %5 : vector<4x256xf32>
    %c0_6 = arith.constant 0 : index
    %c0_7 = arith.constant 0 : index
    %c0_8 = arith.constant 0 : index
    %7 = vector.load %arg5[%c0_6, %c0_7, %c0_8] : memref<1x4x256xf32, #tpu.memory_space<vmem>>, vector<1x4x256xf32>
    %8 = vector.shape_cast %7 : vector<1x4x256xf32> to vector<4x256xf32>
    %9 = vector.shape_cast %6 : vector<4x256xf32> to vector<1x4x256xf32>
    tpu.vector_store %arg5[%c0_6, %c0_7, %c0_8], %9 {strides = array<i32>} : memref<1x4x256xf32, #tpu.memory_space<vmem>>, vector<1x4x256xf32>,
    return
  }
  func.func @transform_0(%arg0: i32, %arg1: i32) -> (i32, i32) {
    %c0_i32 = arith.constant 0 : i32
    %c0_i32_0 = arith.constant 0 : i32
    %c0_i32_1 = arith.constant 0 : i32
    return %c0_i32, %c0_i32_0 : i32, i32
  }
  func.func @transform_1(%arg0: i32, %arg1: i32) -> (i32, i32) {
    %c0_i32 = arith.constant 0 : i32
    %c0_i32_0 = arith.constant 0 : i32
    %c0_i32_1 = arith.constant 0 : i32
    return %c0_i32, %c0_i32_0 : i32, i32
  }
  func.func @transform_2(%arg0: i32, %arg1: i32) -> (i32, i32, i32) {
    %c0_i32 = arith.constant 0 : i32
    %c0_i32_0 = arith.constant 0 : i32
    return %arg0, %c0_i32, %arg1 : i32, i32, i32
  }
  func.func @transform_3(%arg0: i32, %arg1: i32) -> (i32, i32, i32) {
    %c0_i32 = arith.constant 0 : i32
    %c0_i32_0 = arith.constant 0 : i32
    return %arg0, %c0_i32, %arg1 : i32, i32, i32
  }
}

module attributes {stable_mosaic.version = 11 : i64} {
  func.func @_contract_kernel(%arg0: i32, %arg1: i32, %arg2: memref<4x4xf32, #tpu.memory_space<vmem>>, %arg3: memref<4x1xf32, #tpu.memory_space<vmem>>, %arg4: memref<1x4x256xf32, #tpu.memory_space<vmem>>, %arg5: memref<1x4x256xf32, #tpu.memory_space<vmem>>, %arg6: memref<1x4x256xf32, #tpu.memory_space<vmem>>) attributes {dimension_semantics = [#tpu.dimension_semantics<parallel>, #tpu.dimension_semantics<parallel>], iteration_bounds = array<i64: 2, 1>, scalar_prefetch = 0 : i64, scratch_operands = 0 : i64, tpu.core_type = #tpu.core_type<tc>, window_params = [{pipeline_mode = #tpu.pipeline_mode<synchronous>, transform_indices = @transform_0, window_bounds = array<i64: 4, 4>}, {pipeline_mode = #tpu.pipeline_mode<synchronous>, transform_indices = @transform_1, window_bounds = array<i64: 4, 1>}, {transform_indices = @transform_2, window_bounds = array<i64: 1, 4, 256>}, {transform_indices = @transform_3, window_bounds = array<i64: 1, 4, 256>}, {transform_indices = @transform_4, window_bounds = array<i64: 1, 4, 256>}]} {
    %c0 = arith.constant 0 : index
    %c0_0 = arith.constant 0 : index
    %0 = vector.load %arg2[%c0, %c0_0] : memref<4x4xf32, #tpu.memory_space<vmem>>, vector<4x4xf32>
    %c0_1 = arith.constant 0 : index
    %c0_2 = arith.constant 0 : index
    %c0_3 = arith.constant 0 : index
    %1 = vector.load %arg5[%c0_1, %c0_2, %c0_3] : memref<1x4x256xf32, #tpu.memory_space<vmem>>, vector<1x4x256xf32>
    %2 = vector.shape_cast %1 : vector<1x4x256xf32> to vector<4x256xf32>
    %cst = arith.constant dense<0.000000e+00> : vector<4x256xf32>
    %3 = tpu.matmul %0, %2, %cst {dimension_numbers = #tpu.dot_dimension_numbers<[1], [0], [0], [1], [0, 0, 1, 1], [], []>} : vector<4x4xf32>, vector<4x256xf32>, vector<4x256xf32> -> vector<4x256xf32>
    %c0_4 = arith.constant 0 : index
    %c0_5 = arith.constant 0 : index
    %4 = vector.load %arg3[%c0_4, %c0_5] : memref<4x1xf32, #tpu.memory_space<vmem>>, vector<4x1xf32>
    %5 = vector.broadcast %4 : vector<4x1xf32> to vector<4x256xf32>
    %6 = arith.addf %3, %5 : vector<4x256xf32>
    %c0_6 = arith.constant 0 : index
    %c0_7 = arith.constant 0 : index
    %c0_8 = arith.constant 0 : index
    %7 = vector.load %arg4[%c0_6, %c0_7, %c0_8] : memref<1x4x256xf32, #tpu.memory_space<vmem>>, vector<1x4x256xf32>
    %8 = vector.shape_cast %7 : vector<1x4x256xf32> to vector<4x256xf32>
    %9 = arith.addf %6, %8 : vector<4x256xf32>
    %c0_9 = arith.constant 0 : index
    %c0_10 = arith.constant 0 : index
    %c0_11 = arith.constant 0 : index
    %10 = vector.load %arg6[%c0_9, %c0_10, %c0_11] : memref<1x4x256xf32, #tpu.memory_space<vmem>>, vector<1x4x256xf32>
    %11 = vector.shape_cast %10 : vector<1x4x256xf32> to vector<4x256xf32>
    %12 = vector.shape_cast %9 : vector<4x256xf32> to vector<1x4x256xf32>
    tpu.vector_store %arg6[%c0_9, %c0_10, %c0_11], %12 {strides = array<i32>} : memref<1x4x256xf32, #tpu.memory_space<vmem>>, vector<1x4x256xf32>,
    return
  }
  func.func @transform_0(%arg0: i32, %arg1: i32) -> (i32, i32) {
    %c0_i32 = arith.constant 0 : i32
    %c0_i32_0 = arith.constant 0 : i32
    %c0_i32_1 = arith.constant 0 : i32
    return %c0_i32, %c0_i32_0 : i32, i32
  }
  func.func @transform_1(%arg0: i32, %arg1: i32) -> (i32, i32) {
    %c0_i32 = arith.constant 0 : i32
    %c0_i32_0 = arith.constant 0 : i32
    %c0_i32_1 = arith.constant 0 : i32
    return %c0_i32, %c0_i32_0 : i32, i32
  }
  func.func @transform_2(%arg0: i32, %arg1: i32) -> (i32, i32, i32) {
    %c0_i32 = arith.constant 0 : i32
    %c0_i32_0 = arith.constant 0 : i32
    return %arg0, %c0_i32, %arg1 : i32, i32, i32
  }
  func.func @transform_3(%arg0: i32, %arg1: i32) -> (i32, i32, i32) {
    %c0_i32 = arith.constant 0 : i32
    %c0_i32_0 = arith.constant 0 : i32
    return %arg0, %c0_i32, %arg1 : i32, i32, i32
  }
  func.func @transform_4(%arg0: i32, %arg1: i32) -> (i32, i32, i32) {
    %c0_i32 = arith.constant 0 : i32
    %c0_i32_0 = arith.constant 0 : i32
    return %arg0, %c0_i32, %arg1 : i32, i32, i32
  }
}

</mosaic_0001>

<llo_original>
// kernel: a_call__.4
$region0: #{a_call__.4}
  #allocation0 [shape = 'u32[]', space=smem, size = 0x4, offset = 0x4, fixed_abs, tag = 'smem constant byte address 0x4 - core index']
  #allocation1 [shape = 'u32[144,128]{1,0:T(1,128)}', space=vmem, size = 0x12000, scoped, tag = 'internal scratch']
  %s0 = inlined_call_operand.vmem [shape: f32[16,16], index: 0, kind: input, shape index: {}]
  %s1 = inlined_call_operand.vmem [shape: f32[2,4,16,16], index: 1, kind: input, shape index: {}]
  %s2 = inlined_call_operand.vmem [shape: f32[2,1,4,16,16], index: 2, kind: output, shape index: {}]
  %s3 = sld [smem:[#allocation0]]
  $region41: #{a_call__.4} parent=0
    _
  %s5 = ssub.s32 1, %s3
  %s6 = scalar_select 0, %s5, %s3
  loop: start=0, step=1, limit=4
  $region2: #{a_call__.4} parent=0 // loop_pre_header
    _
  $region3: #{a_call__.4} parent=0 // loop_header
    %s8 = sphi 0, %s12
    %p9 = scmp.ge.s32.totalorder %s8, 4
    %s15 = sphi 0, %s27
    %s16 = sphi 0, %s23
    %s17 = sphi 0, %s15
    %s18 = sphi 0, %s16
    %s19 = sphi 0, %s17
    %s20 = sphi 0, %s18
    %s28 = sphi 0, %s28
    %s30 = sphi 0, %s28
    %s31 = sphi 0, %s30
    %s45 = sphi 0, %s31
    %s53 = sphi 0, %s55
    %s56 = sphi 0, %s53
    %s57 = sphi 0, %s56
    %s73 = sphi 0, %s57
    %s81 = sphi 0, %s83
    %s84 = sphi 0, %s81
    %s85 = sphi 0, %s84
    %s101 = sphi 0, %s85
  $region4: #{a_call__.4} parent=0 // loop_header_branch
    %11 = sbr.rel (%p9) target = $region8
  $region5: #{a_call__.4} parent=0 // loop_body
    %s13 = ssub.s32 %s8, 1
    %s14 = ssub.s32 %s8, 2
    %s21 = sadd.s32 1, %s16
    %p22 = scmp.ge.s32.totalorder %s21, 1
    %s23 = scalar_select %p22, 0, %s21
    %s24 = sadd.s32 1, %s15
    %s25 = scalar_select %p22, %s24, %s15
    %p26 = scmp.ge.s32.totalorder %s25, 2
    %s27 = scalar_select %p26, 0, %s25
    %s29 = sadd.s32 %s28, 1
    %p32 = scmp.eq.s32.totalorder %s8, 1
    %p33 = scmp.ne.s32.totalorder %s28, %s30
    %p34 = scmp.eq.s32.totalorder %s8, 0
    %p35 = por %p33, %p34
    %p36 = scmp.ne.s32.totalorder %s28, %s30
    %p37 = scmp.eq.s32.totalorder %s13, 1
    %p38 = por %p36, %p37
    %p39 = scmp.ne.s32.totalorder %s30, %s31
    %p40 = scmp.eq.s32.totalorder %s13, 0
    %p41 = por %p39, %p40
    %p42 = scmp.ne.s32.totalorder %s30, %s31
    %p43 = scmp.eq.s32.totalorder %s14, 1
    %p44 = por %p42, %p43
    %p46 = scmp.ne.s32.totalorder %s31, %s45
    %p47 = scmp.eq.s32.totalorder %s14, 0
    %p48 = por %p46, %p47
    %s49 = ssub.s32 %s15, %s27
    %s50 = ssub.s32 %s16, %s23
    %s51 = sor.u32 %s49, %s50
    %p52 = scmp.eq.s32.totalorder %s51, 0
    %s54 = sadd.s32 %s53, 1
    %s55 = scalar_select %p52, %s53, %s54
    %p58 = pneg %p52
    %p59 = scmp.eq.s32.totalorder %s8, 1
    %p60 = por %p58, %p59
    %p61 = scmp.ne.s32.totalorder %s53, %s56
    %p62 = scmp.eq.s32.totalorder %s8, 0
    %p63 = por %p61, %p62
    %p64 = scmp.ne.s32.totalorder %s53, %s56
    %p65 = scmp.eq.s32.totalorder %s13, 1
    %p66 = por %p64, %p65
    %p67 = scmp.ne.s32.totalorder %s56, %s57
    %p68 = scmp.eq.s32.totalorder %s13, 0
    %p69 = por %p67, %p68
    %p70 = scmp.ne.s32.totalorder %s56, %s57
    %p71 = scmp.eq.s32.totalorder %s14, 1
    %p72 = por %p70, %p71
    %p74 = scmp.ne.s32.totalorder %s57, %s73
    %p75 = scmp.eq.s32.totalorder %s14, 0
    %p76 = por %p74, %p75
    %s77 = ssub.s32 %s15, %s27
    %s78 = ssub.s32 %s16, %s23
    %s79 = sor.u32 %s77, %s78
    %p80 = scmp.eq.s32.totalorder %s79, 0
    %s82 = sadd.s32 %s81, 1
    %s83 = scalar_select %p80, %s81, %s82
    %p86 = pneg %p80
    %p87 = scmp.eq.s32.totalorder %s8, 1
    %p88 = por %p86, %p87
    %p89 = scmp.ne.s32.totalorder %s81, %s84
    %p90 = scmp.eq.s32.totalorder %s8, 0
    %p91 = por %p89, %p90
    %p92 = scmp.ne.s32.totalorder %s81, %s84
    %p93 = scmp.eq.s32.totalorder %s13, 1
    %p94 = por %p92, %p93
    %p95 = scmp.ne.s32.totalorder %s84, %s85
    %p96 = scmp.eq.s32.totalorder %s13, 0
    %p97 = por %p95, %p96
    %p98 = scmp.ne.s32.totalorder %s84, %s85
    %p99 = scmp.eq.s32.totalorder %s14, 1
    %p100 = por %p98, %p99
    %p102 = scmp.ne.s32.totalorder %s85, %s101
    %p103 = scmp.eq.s32.totalorder %s14, 0
    %p104 = por %p102, %p103
    %p105 = scmp.le.s32.totalorder 1, %s8
    %p106 = scmp.lt.s32.totalorder %s8, 3
    %p107 = pnand %p105, %p106
    %p108 = pneg %p107
    // Predicated region
    $region9: #{a_call__.4} parent=5 // pred_check
      _
    $region10: #{a_call__.4} parent=5 // pred_check_branch
      %110 = sbr.rel (%p107) target = $region12
    $region11: #{a_call__.4} parent=5 // pred_region
      %s111 = ssub.s32 %s8, 1
      // Predicated region
      $region13: #{a_call__.4} parent=11 // pred_check
        %p112 = pneg %p41
      $region14: #{a_call__.4} parent=11 // pred_check_branch
        %114 = sbr.rel (%p112) target = $region16
      $region15: #{a_call__.4} parent=11 // pred_region
        _
      $region16: #{a_call__.4} parent=11 // pred_fallthru
        _
    $region12: #{a_call__.4} parent=5 // pred_fallthru
      _
    %p115 = scmp.lt.s32.totalorder %s8, 2
    // Predicated region
    $region17: #{a_call__.4} parent=5 // pred_check
      %p116 = pneg %p115
    $region18: #{a_call__.4} parent=5 // pred_check_branch
      %118 = sbr.rel (%p116) target = $region20
    $region19: #{a_call__.4} parent=5 // pred_region
      // Predicated region
      $region21: #{a_call__.4} parent=19 // pred_check
        %p119 = pneg %p63
      $region22: #{a_call__.4} parent=19 // pred_check_branch
        %121 = sbr.rel (%p119) target = $region24
      $region23: #{a_call__.4} parent=19 // pred_region
        %s122 = smul.u32 2, %s16
        %p123 = scmp.lt.s32.totalorder %s15, 1
        %s124 = scalar_select %p123, %s15, 1
        %p125 = scmp.lt.s32.totalorder %s122, 1
        %s126 = scalar_select %p125, %s122, 1
        %s127 = smul.addr %s124, 8
        %s128 = sadd.s32 %s126, %s127
        %s129 = smul.addr %s128, 8
        %s130 = scalar_lea.vmem %s1, %s129
        %s131 = smul.u32 2, %s16
      $region24: #{a_call__.4} parent=19 // pred_fallthru
        _
    $region20: #{a_call__.4} parent=5 // pred_fallthru
      _
    %p132 = scmp.le.s32.totalorder 1, %s8
    %p133 = scmp.lt.s32.totalorder %s8, 3
    %p134 = pnand %p132, %p133
    %p135 = pneg %p134
    // Predicated region
    $region25: #{a_call__.4} parent=5 // pred_check
      _
    $region26: #{a_call__.4} parent=5 // pred_check_branch
      %137 = sbr.rel (%p134) target = $region28
    $region27: #{a_call__.4} parent=5 // pred_region
      %s138 = ssub.s32 %s8, 1
      %p139 = pneg %p41
      %p140 = pneg %p38
      %s141 = smul.u32 2, %s18
      %p142 = scmp.lt.s32.totalorder %s17, 1
      %s143 = scalar_select %p142, %s17, 1
      %p144 = scmp.lt.s32.totalorder %s141, 1
      %s145 = scalar_select %p144, %s141, 1
      %s146 = smul.addr %s143, 8
      %s147 = sadd.s32 %s145, %s146
      %s148 = smul.addr %s147, 8
      %s149 = scalar_lea.vmem %s1, %s148
      %p150 = pneg %p69
      %p151 = pneg %p66
      %p152 = pneg %p97
      %p153 = pneg %p94
      %s154 = smul.u32 2, %s18
      %p155 = scmp.lt.s32.totalorder %s17, 1
      %s156 = scalar_select %p155, %s17, 1
      %p157 = scmp.lt.s32.totalorder %s154, 1
      %s158 = scalar_select %p157, %s154, 1
      %s159 = smul.addr %s156, 8
      %s160 = sadd.s32 %s158, %s159
      %s161 = smul.addr %s160, 8
      %s162 = scalar_lea.vmem %s2, %s161
      %s163 = smul.u32 2, %s18
      %p164 = scmp.lt.s32.totalorder %s17, 1
      %s165 = scalar_select %p164, %s17, 1
      %p166 = scmp.lt.s32.totalorder %s163, 1
      %s167 = scalar_select %p166, %s163, 1
      %s168 = smul.addr %s165, 8
      %s169 = sadd.s32 %s167, %s168
      %s170 = smul.addr %s169, 8
      %s171 = scalar_lea.vmem %s1, %s170
      %s172 = smul.u32 2, %s18
      %s173 = smul.u32 2, %s18
      %p174 = scmp.lt.s32.totalorder %s17, 1
      %s175 = scalar_select %p174, %s17, 1
      %p176 = scmp.lt.s32.totalorder %s173, 1
      %s177 = scalar_select %p176, %s173, 1
      %s178 = smul.addr %s175, 8
      %s179 = sadd.s32 %s177, %s178
      %s180 = smul.addr %s179, 8
      %s181 = scalar_lea.vmem %s2, %s180
      %s182 = smul.u32 2, %s18
      %v183 = vld [vmem:[%s0] sm:$0xff]
      %v184 = vld [vmem:[%s0 + $0x8] sm:$0xff]
      %v185 = vld [vmem:[%s171] sm:$0xff]
      %v186 = vld [vmem:[%s171 + $0x8] sm:$0xff]
      %v187 = vld [vmem:[%s171 + $0x10] sm:$0xff]
      %v188 = vld [vmem:[%s171 + $0x18] sm:$0xff]
      %v189 = vld [vmem:[%s171 + $0x20] sm:$0xff]
      %v190 = vld [vmem:[%s171 + $0x28] sm:$0xff]
      %v191 = vld [vmem:[%s171 + $0x30] sm:$0xff]
      %v192 = vld [vmem:[%s171 + $0x38] sm:$0xff]
      %vm193 = vcmask 130048
      %v195 = vsel %vm193, %v185, 0
      %v198 = vsel %vm193, %v186, 0
      %v201 = vsel %vm193, %v187, 0
      %v204 = vsel %vm193, %v188, 0
      %v207 = vsel %vm193, %v189, 0
      %v210 = vsel %vm193, %v190, 0
      %v213 = vsel %vm193, %v191, 0
      %v216 = vsel %vm193, %v192, 0
      %218 = vmatprep.subr.mxu0 0.0
      %219 = vmatpush1.msra.mxu0 %v183
      %220 = vmatprep.subr.mxu0 0.0
      %221 = vmatpush1.msra.mxu0 %v184
      %222 = vmatprep.subr.mxu0 0.0
      %223 = vmatpush1.msra.mxu0 0.0
      %224 = vmatprep.subr.mxu0 0.0
      %225 = vmatpush1.msra.mxu0 0.0
      %226 = vmatprep.subr.mxu0 0.0
      %227 = vmatpush1.msra.mxu0 0.0
      %228 = vmatprep.subr.mxu0 0.0
      %229 = vmatpush1.msra.mxu0 0.0
      %230 = vmatprep.subr.mxu0 0.0
      %231 = vmatpush1.msra.mxu0 0.0
      %232 = vmatprep.subr.mxu0 0.0
      %233 = vmatpush1.msra.mxu0 0.0
      %234 = vmatprep.subr.mxu0 0.0
      %235 = vmatpush1.msra.mxu0 0.0
      %236 = vmatprep.subr.mxu0 0.0
      %237 = vmatpush1.msra.mxu0 0.0
      %238 = vmatprep.subr.mxu0 0.0
      %239 = vmatpush1.msra.mxu0 0.0
      %240 = vmatprep.subr.mxu0 0.0
      %241 = vmatpush1.msra.mxu0 0.0
      %242 = vmatprep.subr.mxu0 0.0
      %243 = vmatpush1.msra.mxu0 0.0
      %244 = vmatprep.subr.mxu0 0.0
      %245 = vmatpush1.msra.mxu0 0.0
      %246 = vmatprep.subr.mxu0 0.0
      %247 = vmatpush1.msra.mxu0 0.0
      %248 = vmatprep.subr.mxu0 0.0
      %249 = vmatpush1.msra.mxu0 0.0
      %250 = vmatprep.subr.mxu0 0.0
      %251 = vmatpush1.msra.mxu0 0.0
      %252 = vmatprep.subr.mxu0 0.0
      %253 = vmatpush1.msra.mxu0 0.0
      %254 = vmatprep.subr.mxu0 0.0
      %255 = vmatpush1.msra.mxu0 0.0
      %256 = vmatprep.subr.mxu0 0.0
      %257 = vmatpush1.msra.mxu0 0.0
      %258 = vmatprep.subr.mxu0 0.0
      %259 = vmatpush1.msra.mxu0 0.0
      %260 = vmatprep.subr.mxu0 0.0
      %261 = vmatpush1.msra.mxu0 0.0
      %262 = vmatprep.subr.mxu0 0.0
      %263 = vmatpush1.msra.mxu0 0.0
      %264 = vmatprep.subr.mxu0 0.0
      %265 = vmatpush1.msra.mxu0 0.0
      %266 = vmatprep.subr.mxu0 0.0
      %267 = vmatpush1.msra.mxu0 0.0
      %268 = vmatprep.subr.mxu0 0.0
      %269 = vmatpush1.msra.mxu0 0.0
      %270 = vmatprep.subr.mxu0 0.0
      %271 = vmatpush1.msra.mxu0 0.0
      %272 = vmatprep.subr.mxu0 0.0
      %273 = vmatpush1.msra.mxu0 0.0
      %274 = vmatprep.subr.mxu0 0.0
      %275 = vmatpush1.msra.mxu0 0.0
      %276 = vmatprep.subr.mxu0 0.0
      %277 = vmatpush1.msra.mxu0 0.0
      %278 = vmatprep.subr.mxu0 0.0
      %279 = vmatpush1.msra.mxu0 0.0
      %280 = vmatprep.subr.mxu0 0.0
      %281 = vmatpush1.msra.mxu0 0.0
      %282 = vmatprep.mubr.f32.mxu0 0.0
      %283 = vmatmul.mubr.f32.gmra.mrb[0].mxu0 %v195
      %v284 = vpop.f32.mrb[0].mxu0
      %v285 = vadd.f32 0.0, %v284
      %v286 = vpop.f32.mrb[0].mxu0
      %287 = vmatprep.mubr.f32.mxu0 0.0
      %288 = vmatmul.mubr.f32.gmra.mrb[0].mxu0 %v198
      %v289 = vpop.f32.mrb[0].mxu0
      %v290 = vadd.f32 0.0, %v289
      %v291 = vpop.f32.mrb[0].mxu0
      %292 = vmatprep.mubr.f32.mxu0 0.0
      %293 = vmatmul.mubr.f32.gmra.mrb[0].mxu0 %v201
      %v294 = vpop.f32.mrb[0].mxu0
      %v295 = vadd.f32 0.0, %v294
      %v296 = vpop.f32.mrb[0].mxu0
      %297 = vmatprep.mubr.f32.mxu0 0.0
      %298 = vmatmul.mubr.f32.gmra.mrb[0].mxu0 %v204
      %v299 = vpop.f32.mrb[0].mxu0
      %v300 = vadd.f32 0.0, %v299
      %v301 = vpop.f32.mrb[0].mxu0
      %302 = vmatprep.mubr.f32.mxu0 0.0
      %303 = vmatmul.mubr.f32.gmra.mrb[0].mxu0 %v207
      %v304 = vpop.f32.mrb[0].mxu0
      %v305 = vadd.f32 0.0, %v304
      %v306 = vpop.f32.mrb[0].mxu0
      %307 = vmatprep.mubr.f32.mxu0 0.0
      %308 = vmatmul.mubr.f32.gmra.mrb[0].mxu0 %v210
      %v309 = vpop.f32.mrb[0].mxu0
      %v310 = vadd.f32 0.0, %v309
      %v311 = vpop.f32.mrb[0].mxu0
      %312 = vmatprep.mubr.f32.mxu0 0.0
      %313 = vmatmul.mubr.f32.gmra.mrb[0].mxu0 %v213
      %v314 = vpop.f32.mrb[0].mxu0
      %v315 = vadd.f32 0.0, %v314
      %v316 = vpop.f32.mrb[0].mxu0
      %317 = vmatprep.mubr.f32.mxu0 0.0
      %318 = vmatmul.mubr.f32.gmra.mrb[0].mxu0 %v216
      %v319 = vpop.f32.mrb[0].mxu0
      %v320 = vadd.f32 0.0, %v319
      %v321 = vpop.f32.mrb[0].mxu0
      %322 = vdwg.mxu0
      %323 = vst.msk [vmem:[%s181] sm:$0xff] %vm193, %v285
      %324 = vst.msk [vmem:[%s181 + $0x8] sm:$0xff] %vm193, %v290
      %325 = vst.msk [vmem:[%s181 + $0x10] sm:$0xff] %vm193, %v295
      %326 = vst.msk [vmem:[%s181 + $0x18] sm:$0xff] %vm193, %v300
      %327 = vst.msk [vmem:[%s181 + $0x20] sm:$0xff] %vm193, %v305
      %328 = vst.msk [vmem:[%s181 + $0x28] sm:$0xff] %vm193, %v310
      %329 = vst.msk [vmem:[%s181 + $0x30] sm:$0xff] %vm193, %v315
      %330 = vst.msk [vmem:[%s181 + $0x38] sm:$0xff] %vm193, %v320
      %s331 = smul.u32 2, %s18
      %p332 = scmp.lt.s32.totalorder %s17, 1
      %s333 = scalar_select %p332, %s17, 1
      %p334 = scmp.lt.s32.totalorder %s331, 1
      %s335 = scalar_select %p334, %s331, 1
      %s336 = smul.addr %s333, 8
      %s337 = sadd.s32 %s335, %s336
      %s338 = smul.addr %s337, 8
      %s339 = scalar_lea.vmem %s2, %s338
      // Predicated region
      $region29: #{a_call__.4} parent=27 // pred_check
        %p340 = pneg %p94
      $region30: #{a_call__.4} parent=27 // pred_check_branch
        %342 = sbr.rel (%p340) target = $region32
      $region31: #{a_call__.4} parent=27 // pred_region
        %s343 = smul.u32 2, %s18
      $region32: #{a_call__.4} parent=27 // pred_fallthru
        _
    $region28: #{a_call__.4} parent=5 // pred_fallthru
      _
    %p344 = scmp.le.s32.totalorder 2, %s8
    // Predicated region
    $region33: #{a_call__.4} parent=5 // pred_check
      %p345 = pneg %p344
    $region34: #{a_call__.4} parent=5 // pred_check_branch
      %347 = sbr.rel (%p345) target = $region36
    $region35: #{a_call__.4} parent=5 // pred_region
      %s348 = ssub.s32 %s8, 2
      // Predicated region
      $region37: #{a_call__.4} parent=35 // pred_check
        %p349 = pneg %p100
      $region38: #{a_call__.4} parent=35 // pred_check_branch
        %351 = sbr.rel (%p349) target = $region40
      $region39: #{a_call__.4} parent=35 // pred_region
        %s352 = smul.u32 2, %s20
        %p353 = scmp.lt.s32.totalorder %s19, 1
        %s354 = scalar_select %p353, %s19, 1
        %p355 = scmp.lt.s32.totalorder %s352, 1
        %s356 = scalar_select %p355, %s352, 1
        %s357 = smul.addr %s354, 8
        %s358 = sadd.s32 %s356, %s357
        %s359 = smul.addr %s358, 8
        %s360 = scalar_lea.vmem %s2, %s359
      $region40: #{a_call__.4} parent=35 // pred_fallthru
        _
    $region36: #{a_call__.4} parent=5 // pred_fallthru
      _
  $region6: #{a_call__.4} parent=0 // loop_footer
    %s12 = sadd.s32 1, %s8
  $region7: #{a_call__.4} parent=0 // loop_footer_branch
    %7 = sbr.rel target = $region3
  $region8: #{a_call__.4} parent=0 // loop_exit
    _

// kernel: a_call__.3
$region0: #{a_call__.3}
  #allocation0 [shape = 'u32[]', space=smem, size = 0x4, offset = 0x4, fixed_abs, tag = 'smem constant byte address 0x4 - core index']
  #allocation1 [shape = 'u32[144,128]{1,0:T(1,128)}', space=vmem, size = 0x12000, scoped, tag = 'internal scratch']
  %s0 = inlined_call_operand.vmem [shape: f32[4,8], index: 0, kind: input, shape index: {}]
  %s1 = inlined_call_operand.vmem [shape: f32[4,1], index: 1, kind: input, shape index: {}]
  %s2 = inlined_call_operand.vmem [shape: f32[2,8,256], index: 2, kind: input, shape index: {}]
  %s3 = inlined_call_operand.vmem [shape: f32[2,4,256], index: 3, kind: output, shape index: {}]
  %s4 = sld [smem:[#allocation0]]
  $region45: #{a_call__.3} parent=0
    _
  %s6 = ssub.s32 1, %s4
  %s7 = scalar_select 0, %s6, %s4
  loop: start=0, step=1, limit=4
  $region2: #{a_call__.3} parent=0 // loop_pre_header
    _
  $region3: #{a_call__.3} parent=0 // loop_header
    %s9 = sphi 0, %s13
    %p10 = scmp.ge.s32.totalorder %s9, 4
    %s16 = sphi 0, %s28
    %s17 = sphi 0, %s24
    %s18 = sphi 0, %s16
    %s19 = sphi 0, %s17
    %s20 = sphi 0, %s18
    %s21 = sphi 0, %s19
    %s29 = sphi 0, %s29
    %s31 = sphi 0, %s29
    %s32 = sphi 0, %s31
    %s46 = sphi 0, %s32
    %s50 = sphi 0, %s50
    %s52 = sphi 0, %s50
    %s53 = sphi 0, %s52
    %s67 = sphi 0, %s53
    %s75 = sphi 0, %s77
    %s78 = sphi 0, %s75
    %s79 = sphi 0, %s78
    %s95 = sphi 0, %s79
    %s103 = sphi 0, %s105
    %s106 = sphi 0, %s103
    %s107 = sphi 0, %s106
    %s123 = sphi 0, %s107
  $region4: #{a_call__.3} parent=0 // loop_header_branch
    %12 = sbr.rel (%p10) target = $region8
  $region5: #{a_call__.3} parent=0 // loop_body
    %s14 = ssub.s32 %s9, 1
    %s15 = ssub.s32 %s9, 2
    %s22 = sadd.s32 1, %s17
    %p23 = scmp.ge.s32.totalorder %s22, 1
    %s24 = scalar_select %p23, 0, %s22
    %s25 = sadd.s32 1, %s16
    %s26 = scalar_select %p23, %s25, %s16
    %p27 = scmp.ge.s32.totalorder %s26, 2
    %s28 = scalar_select %p27, 0, %s26
    %s30 = sadd.s32 %s29, 1
    %p33 = scmp.eq.s32.totalorder %s9, 1
    %p34 = scmp.ne.s32.totalorder %s29, %s31
    %p35 = scmp.eq.s32.totalorder %s9, 0
    %p36 = por %p34, %p35
    %p37 = scmp.ne.s32.totalorder %s29, %s31
    %p38 = scmp.eq.s32.totalorder %s14, 1
    %p39 = por %p37, %p38
    %p40 = scmp.ne.s32.totalorder %s31, %s32
    %p41 = scmp.eq.s32.totalorder %s14, 0
    %p42 = por %p40, %p41
    %p43 = scmp.ne.s32.totalorder %s31, %s32
    %p44 = scmp.eq.s32.totalorder %s15, 1
    %p45 = por %p43, %p44
    %p47 = scmp.ne.s32.totalorder %s32, %s46
    %p48 = scmp.eq.s32.totalorder %s15, 0
    %p49 = por %p47, %p48
    %s51 = sadd.s32 %s50, 1
    %p54 = scmp.eq.s32.totalorder %s9, 1
    %p55 = scmp.ne.s32.totalorder %s50, %s52
    %p56 = scmp.eq.s32.totalorder %s9, 0
    %p57 = por %p55, %p56
    %p58 = scmp.ne.s32.totalorder %s50, %s52
    %p59 = scmp.eq.s32.totalorder %s14, 1
    %p60 = por %p58, %p59
    %p61 = scmp.ne.s32.totalorder %s52, %s53
    %p62 = scmp.eq.s32.totalorder %s14, 0
    %p63 = por %p61, %p62
    %p64 = scmp.ne.s32.totalorder %s52, %s53
    %p65 = scmp.eq.s32.totalorder %s15, 1
    %p66 = por %p64, %p65
    %p68 = scmp.ne.s32.totalorder %s53, %s67
    %p69 = scmp.eq.s32.totalorder %s15, 0
    %p70 = por %p68, %p69
    %s71 = ssub.s32 %s16, %s28
    %s72 = ssub.s32 %s17, %s24
    %s73 = sor.u32 %s71, %s72
    %p74 = scmp.eq.s32.totalorder %s73, 0
    %s76 = sadd.s32 %s75, 1
    %s77 = scalar_select %p74, %s75, %s76
    %p80 = pneg %p74
    %p81 = scmp.eq.s32.totalorder %s9, 1
    %p82 = por %p80, %p81
    %p83 = scmp.ne.s32.totalorder %s75, %s78
    %p84 = scmp.eq.s32.totalorder %s9, 0
    %p85 = por %p83, %p84
    %p86 = scmp.ne.s32.totalorder %s75, %s78
    %p87 = scmp.eq.s32.totalorder %s14, 1
    %p88 = por %p86, %p87
    %p89 = scmp.ne.s32.totalorder %s78, %s79
    %p90 = scmp.eq.s32.totalorder %s14, 0
    %p91 = por %p89, %p90
    %p92 = scmp.ne.s32.totalorder %s78, %s79
    %p93 = scmp.eq.s32.totalorder %s15, 1
    %p94 = por %p92, %p93
    %p96 = scmp.ne.s32.totalorder %s79, %s95
    %p97 = scmp.eq.s32.totalorder %s15, 0
    %p98 = por %p96, %p97
    %s99 = ssub.s32 %s16, %s28
    %s100 = ssub.s32 %s17, %s24
    %s101 = sor.u32 %s99, %s100
    %p102 = scmp.eq.s32.totalorder %s101, 0
    %s104 = sadd.s32 %s103, 1
    %s105 = scalar_select %p102, %s103, %s104
    %p108 = pneg %p102
    %p109 = scmp.eq.s32.totalorder %s9, 1
    %p110 = por %p108, %p109
    %p111 = scmp.ne.s32.totalorder %s103, %s106
    %p112 = scmp.eq.s32.totalorder %s9, 0
    %p113 = por %p111, %p112
    %p114 = scmp.ne.s32.totalorder %s103, %s106
    %p115 = scmp.eq.s32.totalorder %s14, 1
    %p116 = por %p114, %p115
    %p117 = scmp.ne.s32.totalorder %s106, %s107
    %p118 = scmp.eq.s32.totalorder %s14, 0
    %p119 = por %p117, %p118
    %p120 = scmp.ne.s32.totalorder %s106, %s107
    %p121 = scmp.eq.s32.totalorder %s15, 1
    %p122 = por %p120, %p121
    %p124 = scmp.ne.s32.totalorder %s107, %s123
    %p125 = scmp.eq.s32.totalorder %s15, 0
    %p126 = por %p124, %p125
    %p127 = scmp.le.s32.totalorder 1, %s9
    %p128 = scmp.lt.s32.totalorder %s9, 3
    %p129 = pnand %p127, %p128
    %p130 = pneg %p129
    // Predicated region
    $region9: #{a_call__.3} parent=5 // pred_check
      _
    $region10: #{a_call__.3} parent=5 // pred_check_branch
      %132 = sbr.rel (%p129) target = $region12
    $region11: #{a_call__.3} parent=5 // pred_region
      %s133 = ssub.s32 %s9, 1
      // Predicated region
      $region13: #{a_call__.3} parent=11 // pred_check
        %p134 = pneg %p42
      $region14: #{a_call__.3} parent=11 // pred_check_branch
        %136 = sbr.rel (%p134) target = $region16
      $region15: #{a_call__.3} parent=11 // pred_region
        _
      $region16: #{a_call__.3} parent=11 // pred_fallthru
        _
      // Predicated region
      $region17: #{a_call__.3} parent=11 // pred_check
        %p137 = pneg %p63
      $region18: #{a_call__.3} parent=11 // pred_check_branch
        %139 = sbr.rel (%p137) target = $region20
      $region19: #{a_call__.3} parent=11 // pred_region
        _
      $region20: #{a_call__.3} parent=11 // pred_fallthru
        _
    $region12: #{a_call__.3} parent=5 // pred_fallthru
      _
    %p140 = scmp.lt.s32.totalorder %s9, 2
    // Predicated region
    $region21: #{a_call__.3} parent=5 // pred_check
      %p141 = pneg %p140
    $region22: #{a_call__.3} parent=5 // pred_check_branch
      %143 = sbr.rel (%p141) target = $region24
    $region23: #{a_call__.3} parent=5 // pred_region
      // Predicated region
      $region25: #{a_call__.3} parent=23 // pred_check
        %p144 = pneg %p85
      $region26: #{a_call__.3} parent=23 // pred_check_branch
        %146 = sbr.rel (%p144) target = $region28
      $region27: #{a_call__.3} parent=23 // pred_region
        %s147 = smul.u32 2, %s17
        %p148 = scmp.lt.s32.totalorder %s16, 1
        %s149 = scalar_select %p148, %s16, 1
        %p150 = scmp.lt.s32.totalorder %s147, 1
        %s151 = scalar_select %p150, %s147, 1
        %s152 = smul.addr %s149, 2
        %s153 = sadd.s32 %s151, %s152
        %s154 = smul.addr %s153, 8
        %s155 = scalar_lea.vmem %s2, %s154
        %s156 = smul.u32 2, %s17
      $region28: #{a_call__.3} parent=23 // pred_fallthru
        _
    $region24: #{a_call__.3} parent=5 // pred_fallthru
      _
    %p157 = scmp.le.s32.totalorder 1, %s9
    %p158 = scmp.lt.s32.totalorder %s9, 3
    %p159 = pnand %p157, %p158
    %p160 = pneg %p159
    // Predicated region
    $region29: #{a_call__.3} parent=5 // pred_check
      _
    $region30: #{a_call__.3} parent=5 // pred_check_branch
      %162 = sbr.rel (%p159) target = $region32
    $region31: #{a_call__.3} parent=5 // pred_region
      %s163 = ssub.s32 %s9, 1
      %p164 = pneg %p42
      %p165 = pneg %p39
      %p166 = pneg %p63
      %p167 = pneg %p60
      %s168 = smul.u32 2, %s19
      %p169 = scmp.lt.s32.totalorder %s18, 1
      %s170 = scalar_select %p169, %s18, 1
      %p171 = scmp.lt.s32.totalorder %s168, 1
      %s172 = scalar_select %p171, %s168, 1
      %s173 = smul.addr %s170, 2
      %s174 = sadd.s32 %s172, %s173
      %s175 = smul.addr %s174, 8
      %s176 = scalar_lea.vmem %s2, %s175
      %p177 = pneg %p91
      %p178 = pneg %p88
      %p179 = pneg %p119
      %p180 = pneg %p116
      %s181 = smul.u32 2, %s19
      %p182 = scmp.lt.s32.totalorder %s18, 1
      %s183 = scalar_select %p182, %s18, 1
      %p184 = scmp.lt.s32.totalorder %s181, 1
      %s185 = scalar_select %p184, %s181, 1
      %s186 = smul.addr %s183, 2
      %s187 = sadd.s32 %s185, %s186
      %s188 = smul.addr %s187, 4
      %s189 = scalar_lea.vmem %s3, %s188
      %s190 = smul.u32 2, %s19
      %p191 = scmp.lt.s32.totalorder %s18, 1
      %s192 = scalar_select %p191, %s18, 1
      %p193 = scmp.lt.s32.totalorder %s190, 1
      %s194 = scalar_select %p193, %s190, 1
      %s195 = smul.addr %s192, 2
      %s196 = sadd.s32 %s194, %s195
      %s197 = smul.addr %s196, 8
      %s198 = scalar_lea.vmem %s2, %s197
      %s199 = smul.u32 2, %s19
      %s200 = smul.u32 2, %s19
      %p201 = scmp.lt.s32.totalorder %s18, 1
      %s202 = scalar_select %p201, %s18, 1
      %p203 = scmp.lt.s32.totalorder %s200, 1
      %s204 = scalar_select %p203, %s200, 1
      %s205 = smul.addr %s202, 2
      %s206 = sadd.s32 %s204, %s205
      %s207 = smul.addr %s206, 4
      %s208 = scalar_lea.vmem %s3, %s207
      %s209 = smul.u32 2, %s19
      %v210 = vld [vmem:[%s0] sm:$0xf]
      %v211 = vld [vmem:[%s198] sm:$0xff]
      %v212 = vld [vmem:[%s198 + $0x8] sm:$0xff]
      %v213 = vld [vmem:[%s1] sm:$0xf]
      %215 = vset.pattern.permute.xlu0 0
      %216 = vperm.xlu0 %215, %v213
      %v217 = vpop.permute.xlu0 %216
      %vm219 = vcmask 64512
      %v221 = vsel %vm219, %v210, 0
      %223 = vmatprep.subr.mxu0 %v212
      %224 = vmatpush1.msra.mxu0 %v211
      %225 = vmatprep.subr.mxu0 0.0
      %226 = vmatpush1.msra.mxu0 0.0
      %227 = vmatprep.subr.mxu0 0.0
      %228 = vmatpush1.msra.mxu0 0.0
      %229 = vmatprep.subr.mxu0 0.0
      %230 = vmatpush1.msra.mxu0 0.0
      %231 = vmatprep.subr.mxu0 0.0
      %232 = vmatpush1.msra.mxu0 0.0
      %233 = vmatprep.subr.mxu0 0.0
      %234 = vmatpush1.msra.mxu0 0.0
      %235 = vmatprep.subr.mxu0 0.0
      %236 = vmatpush1.msra.mxu0 0.0
      %237 = vmatprep.subr.mxu0 0.0
      %238 = vmatpush1.msra.mxu0 0.0
      %239 = vmatprep.subr.mxu0 0.0
      %240 = vmatpush1.msra.mxu0 0.0
      %241 = vmatprep.subr.mxu0 0.0
      %242 = vmatpush1.msra.mxu0 0.0
      %243 = vmatprep.subr.mxu0 0.0
      %244 = vmatpush1.msra.mxu0 0.0
      %245 = vmatprep.subr.mxu0 0.0
      %246 = vmatpush1.msra.mxu0 0.0
      %247 = vmatprep.subr.mxu0 0.0
      %248 = vmatpush1.msra.mxu0 0.0
      %249 = vmatprep.subr.mxu0 0.0
      %250 = vmatpush1.msra.mxu0 0.0
      %251 = vmatprep.subr.mxu0 0.0
      %252 = vmatpush1.msra.mxu0 0.0
      %253 = vmatprep.subr.mxu0 0.0
      %254 = vmatpush1.msra.mxu0 0.0
      %255 = vmatprep.subr.mxu0 0.0
      %256 = vmatpush1.msra.mxu0 0.0
      %257 = vmatprep.subr.mxu0 0.0
      %258 = vmatpush1.msra.mxu0 0.0
      %259 = vmatprep.subr.mxu0 0.0
      %260 = vmatpush1.msra.mxu0 0.0
      %261 = vmatprep.subr.mxu0 0.0
      %262 = vmatpush1.msra.mxu0 0.0
      %263 = vmatprep.subr.mxu0 0.0
      %264 = vmatpush1.msra.mxu0 0.0
      %265 = vmatprep.subr.mxu0 0.0
      %266 = vmatpush1.msra.mxu0 0.0
      %267 = vmatprep.subr.mxu0 0.0
      %268 = vmatpush1.msra.mxu0 0.0
      %269 = vmatprep.subr.mxu0 0.0
      %270 = vmatpush1.msra.mxu0 0.0
      %271 = vmatprep.subr.mxu0 0.0
      %272 = vmatpush1.msra.mxu0 0.0
      %273 = vmatprep.subr.mxu0 0.0
      %274 = vmatpush1.msra.mxu0 0.0
      %275 = vmatprep.subr.mxu0 0.0
      %276 = vmatpush1.msra.mxu0 0.0
      %277 = vmatprep.subr.mxu0 0.0
      %278 = vmatpush1.msra.mxu0 0.0
      %279 = vmatprep.subr.mxu0 0.0
      %280 = vmatpush1.msra.mxu0 0.0
      %281 = vmatprep.subr.mxu0 0.0
      %282 = vmatpush1.msra.mxu0 0.0
      %283 = vmatprep.subr.mxu0 0.0
      %284 = vmatpush1.msra.mxu0 0.0
      %285 = vmatprep.subr.mxu0 0.0
      %286 = vmatpush1.msra.mxu0 0.0
      %287 = vmatprep.mubr.f32.mxu0 0.0
      %288 = vmatmul.mubr.f32.gmra.mrb[0].mxu0 %v221
      %v289 = vpop.f32.mrb[0].mxu0
      %v290 = vadd.f32 %v217, %v289
      %v291 = vpop.f32.mrb[0].mxu0
      %v292 = vadd.f32 %v217, %v291
      %293 = vdwg.mxu0
      %v296 = vcombine.low %v290, %v292
      %298 = vst [vmem:[%s208] sm:$0xff] %v296
      %s299 = smul.u32 2, %s19
      %p300 = scmp.lt.s32.totalorder %s18, 1
      %s301 = scalar_select %p300, %s18, 1
      %p302 = scmp.lt.s32.totalorder %s299, 1
      %s303 = scalar_select %p302, %s299, 1
      %s304 = smul.addr %s301, 2
      %s305 = sadd.s32 %s303, %s304
      %s306 = smul.addr %s305, 4
      %s307 = scalar_lea.vmem %s3, %s306
      // Predicated region
      $region33: #{a_call__.3} parent=31 // pred_check
        %p308 = pneg %p116
      $region34: #{a_call__.3} parent=31 // pred_check_branch
        %310 = sbr.rel (%p308) target = $region36
      $region35: #{a_call__.3} parent=31 // pred_region
        %s311 = smul.u32 2, %s19
      $region36: #{a_call__.3} parent=31 // pred_fallthru
        _
    $region32: #{a_call__.3} parent=5 // pred_fallthru
      _
    %p312 = scmp.le.s32.totalorder 2, %s9
    // Predicated region
    $region37: #{a_call__.3} parent=5 // pred_check
      %p313 = pneg %p312
    $region38: #{a_call__.3} parent=5 // pred_check_branch
      %315 = sbr.rel (%p313) target = $region40
    $region39: #{a_call__.3} parent=5 // pred_region
      %s316 = ssub.s32 %s9, 2
      // Predicated region
      $region41: #{a_call__.3} parent=39 // pred_check
        %p317 = pneg %p122
      $region42: #{a_call__.3} parent=39 // pred_check_branch
        %319 = sbr.rel (%p317) target = $region44
      $region43: #{a_call__.3} parent=39 // pred_region
        %s320 = smul.u32 2, %s21
        %p321 = scmp.lt.s32.totalorder %s20, 1
        %s322 = scalar_select %p321, %s20, 1
        %p323 = scmp.lt.s32.totalorder %s320, 1
        %s324 = scalar_select %p323, %s320, 1
        %s325 = smul.addr %s322, 2
        %s326 = sadd.s32 %s324, %s325
        %s327 = smul.addr %s326, 4
        %s328 = scalar_lea.vmem %s3, %s327
      $region44: #{a_call__.3} parent=39 // pred_fallthru
        _
    $region40: #{a_call__.3} parent=5 // pred_fallthru
      _
  $region6: #{a_call__.3} parent=0 // loop_footer
    %s13 = sadd.s32 1, %s9
  $region7: #{a_call__.3} parent=0 // loop_footer_branch
    %8 = sbr.rel target = $region3
  $region8: #{a_call__.3} parent=0 // loop_exit
    _

// kernel: a_call__.5
$region0: #{a_call__.5}
  #allocation0 [shape = 'u32[]', space=smem, size = 0x4, offset = 0x4, fixed_abs, tag = 'smem constant byte address 0x4 - core index']
  #allocation1 [shape = 'u32[144,128]{1,0:T(1,128)}', space=vmem, size = 0x12000, scoped, tag = 'internal scratch']
  %s0 = inlined_call_operand.vmem [shape: f32[4,4], index: 0, kind: input, shape index: {}]
  %s1 = inlined_call_operand.vmem [shape: f32[4,1], index: 1, kind: input, shape index: {}]
  %s2 = inlined_call_operand.vmem [shape: f32[2,4,256], index: 2, kind: input, shape index: {}]
  %s3 = inlined_call_operand.vmem [shape: f32[2,4,256], index: 3, kind: input, shape index: {}]
  %s4 = inlined_call_operand.vmem [shape: f32[2,4,256], index: 4, kind: output, shape index: {}]
  %s5 = sld [smem:[#allocation0]]
  $region49: #{a_call__.5} parent=0
    _
  %s7 = ssub.s32 1, %s5
  %s8 = scalar_select 0, %s7, %s5
  loop: start=0, step=1, limit=4
  $region2: #{a_call__.5} parent=0 // loop_pre_header
    _
  $region3: #{a_call__.5} parent=0 // loop_header
    %s10 = sphi 0, %s14
    %p11 = scmp.ge.s32.totalorder %s10, 4
    %s17 = sphi 0, %s29
    %s18 = sphi 0, %s25
    %s19 = sphi 0, %s17
    %s20 = sphi 0, %s18
    %s21 = sphi 0, %s19
    %s22 = sphi 0, %s20
    %s30 = sphi 0, %s30
    %s32 = sphi 0, %s30
    %s33 = sphi 0, %s32
    %s47 = sphi 0, %s33
    %s51 = sphi 0, %s51
    %s53 = sphi 0, %s51
    %s54 = sphi 0, %s53
    %s68 = sphi 0, %s54
    %s76 = sphi 0, %s78
    %s79 = sphi 0, %s76
    %s80 = sphi 0, %s79
    %s96 = sphi 0, %s80
    %s104 = sphi 0, %s106
    %s107 = sphi 0, %s104
    %s108 = sphi 0, %s107
    %s124 = sphi 0, %s108
    %s132 = sphi 0, %s134
    %s135 = sphi 0, %s132
    %s136 = sphi 0, %s135
    %s152 = sphi 0, %s136
  $region4: #{a_call__.5} parent=0 // loop_header_branch
    %13 = sbr.rel (%p11) target = $region8
  $region5: #{a_call__.5} parent=0 // loop_body
    %s15 = ssub.s32 %s10, 1
    %s16 = ssub.s32 %s10, 2
    %s23 = sadd.s32 1, %s18
    %p24 = scmp.ge.s32.totalorder %s23, 1
    %s25 = scalar_select %p24, 0, %s23
    %s26 = sadd.s32 1, %s17
    %s27 = scalar_select %p24, %s26, %s17
    %p28 = scmp.ge.s32.totalorder %s27, 2
    %s29 = scalar_select %p28, 0, %s27
    %s31 = sadd.s32 %s30, 1
    %p34 = scmp.eq.s32.totalorder %s10, 1
    %p35 = scmp.ne.s32.totalorder %s30, %s32
    %p36 = scmp.eq.s32.totalorder %s10, 0
    %p37 = por %p35, %p36
    %p38 = scmp.ne.s32.totalorder %s30, %s32
    %p39 = scmp.eq.s32.totalorder %s15, 1
    %p40 = por %p38, %p39
    %p41 = scmp.ne.s32.totalorder %s32, %s33
    %p42 = scmp.eq.s32.totalorder %s15, 0
    %p43 = por %p41, %p42
    %p44 = scmp.ne.s32.totalorder %s32, %s33
    %p45 = scmp.eq.s32.totalorder %s16, 1
    %p46 = por %p44, %p45
    %p48 = scmp.ne.s32.totalorder %s33, %s47
    %p49 = scmp.eq.s32.totalorder %s16, 0
    %p50 = por %p48, %p49
    %s52 = sadd.s32 %s51, 1
    %p55 = scmp.eq.s32.totalorder %s10, 1
    %p56 = scmp.ne.s32.totalorder %s51, %s53
    %p57 = scmp.eq.s32.totalorder %s10, 0
    %p58 = por %p56, %p57
    %p59 = scmp.ne.s32.totalorder %s51, %s53
    %p60 = scmp.eq.s32.totalorder %s15, 1
    %p61 = por %p59, %p60
    %p62 = scmp.ne.s32.totalorder %s53, %s54
    %p63 = scmp.eq.s32.totalorder %s15, 0
    %p64 = por %p62, %p63
    %p65 = scmp.ne.s32.totalorder %s53, %s54
    %p66 = scmp.eq.s32.totalorder %s16, 1
    %p67 = por %p65, %p66
    %p69 = scmp.ne.s32.totalorder %s54, %s68
    %p70 = scmp.eq.s32.totalorder %s16, 0
    %p71 = por %p69, %p70
    %s72 = ssub.s32 %s17, %s29
    %s73 = ssub.s32 %s18, %s25
    %s74 = sor.u32 %s72, %s73
    %p75 = scmp.eq.s32.totalorder %s74, 0
    %s77 = sadd.s32 %s76, 1
    %s78 = scalar_select %p75, %s76, %s77
    %p81 = pneg %p75
    %p82 = scmp.eq.s32.totalorder %s10, 1
    %p83 = por %p81, %p82
    %p84 = scmp.ne.s32.totalorder %s76, %s79
    %p85 = scmp.eq.s32.totalorder %s10, 0
    %p86 = por %p84, %p85
    %p87 = scmp.ne.s32.totalorder %s76, %s79
    %p88 = scmp.eq.s32.totalorder %s15, 1
    %p89 = por %p87, %p88
    %p90 = scmp.ne.s32.totalorder %s79, %s80
    %p91 = scmp.eq.s32.totalorder %s15, 0
    %p92 = por %p90, %p91
    %p93 = scmp.ne.s32.totalorder %s79, %s80
    %p94 = scmp.eq.s32.totalorder %s16, 1
    %p95 = por %p93, %p94
    %p97 = scmp.ne.s32.totalorder %s80, %s96
    %p98 = scmp.eq.s32.totalorder %s16, 0
    %p99 = por %p97, %p98
    %s100 = ssub.s32 %s17, %s29
    %s101 = ssub.s32 %s18, %s25
    %s102 = sor.u32 %s100, %s101
    %p103 = scmp.eq.s32.totalorder %s102, 0
    %s105 = sadd.s32 %s104, 1
    %s106 = scalar_select %p103, %s104, %s105
    %p109 = pneg %p103
    %p110 = scmp.eq.s32.totalorder %s10, 1
    %p111 = por %p109, %p110
    %p112 = scmp.ne.s32.totalorder %s104, %s107
    %p113 = scmp.eq.s32.totalorder %s10, 0
    %p114 = por %p112, %p113
    %p115 = scmp.ne.s32.totalorder %s104, %s107
    %p116 = scmp.eq.s32.totalorder %s15, 1
    %p117 = por %p115, %p116
    %p118 = scmp.ne.s32.totalorder %s107, %s108
    %p119 = scmp.eq.s32.totalorder %s15, 0
    %p120 = por %p118, %p119
    %p121 = scmp.ne.s32.totalorder %s107, %s108
    %p122 = scmp.eq.s32.totalorder %s16, 1
    %p123 = por %p121, %p122
    %p125 = scmp.ne.s32.totalorder %s108, %s124
    %p126 = scmp.eq.s32.totalorder %s16, 0
    %p127 = por %p125, %p126
    %s128 = ssub.s32 %s17, %s29
    %s129 = ssub.s32 %s18, %s25
    %s130 = sor.u32 %s128, %s129
    %p131 = scmp.eq.s32.totalorder %s130, 0
    %s133 = sadd.s32 %s132, 1
    %s134 = scalar_select %p131, %s132, %s133
    %p137 = pneg %p131
    %p138 = scmp.eq.s32.totalorder %s10, 1
    %p139 = por %p137, %p138
    %p140 = scmp.ne.s32.totalorder %s132, %s135
    %p141 = scmp.eq.s32.totalorder %s10, 0
    %p142 = por %p140, %p141
    %p143 = scmp.ne.s32.totalorder %s132, %s135
    %p144 = scmp.eq.s32.totalorder %s15, 1
    %p145 = por %p143, %p144
    %p146 = scmp.ne.s32.totalorder %s135, %s136
    %p147 = scmp.eq.s32.totalorder %s15, 0
    %p148 = por %p146, %p147
    %p149 = scmp.ne.s32.totalorder %s135, %s136
    %p150 = scmp.eq.s32.totalorder %s16, 1
    %p151 = por %p149, %p150
    %p153 = scmp.ne.s32.totalorder %s136, %s152
    %p154 = scmp.eq.s32.totalorder %s16, 0
    %p155 = por %p153, %p154
    %p156 = scmp.le.s32.totalorder 1, %s10
    %p157 = scmp.lt.s32.totalorder %s10, 3
    %p158 = pnand %p156, %p157
    %p159 = pneg %p158
    // Predicated region
    $region9: #{a_call__.5} parent=5 // pred_check
      _
    $region10: #{a_call__.5} parent=5 // pred_check_branch
      %161 = sbr.rel (%p158) target = $region12
    $region11: #{a_call__.5} parent=5 // pred_region
      %s162 = ssub.s32 %s10, 1
      // Predicated region
      $region13: #{a_call__.5} parent=11 // pred_check
        %p163 = pneg %p43
      $region14: #{a_call__.5} parent=11 // pred_check_branch
        %165 = sbr.rel (%p163) target = $region16
      $region15: #{a_call__.5} parent=11 // pred_region
        _
      $region16: #{a_call__.5} parent=11 // pred_fallthru
        _
      // Predicated region
      $region17: #{a_call__.5} parent=11 // pred_check
        %p166 = pneg %p64
      $region18: #{a_call__.5} parent=11 // pred_check_branch
        %168 = sbr.rel (%p166) target = $region20
      $region19: #{a_call__.5} parent=11 // pred_region
        _
      $region20: #{a_call__.5} parent=11 // pred_fallthru
        _
    $region12: #{a_call__.5} parent=5 // pred_fallthru
      _
    %p169 = scmp.lt.s32.totalorder %s10, 2
    // Predicated region
    $region21: #{a_call__.5} parent=5 // pred_check
      %p170 = pneg %p169
    $region22: #{a_call__.5} parent=5 // pred_check_branch
      %172 = sbr.rel (%p170) target = $region24
    $region23: #{a_call__.5} parent=5 // pred_region
      // Predicated region
      $region25: #{a_call__.5} parent=23 // pred_check
        %p173 = pneg %p86
      $region26: #{a_call__.5} parent=23 // pred_check_branch
        %175 = sbr.rel (%p173) target = $region28
      $region27: #{a_call__.5} parent=23 // pred_region
        %s176 = smul.u32 2, %s18
        %p177 = scmp.lt.s32.totalorder %s17, 1
        %s178 = scalar_select %p177, %s17, 1
        %p179 = scmp.lt.s32.totalorder %s176, 1
        %s180 = scalar_select %p179, %s176, 1
        %s181 = smul.addr %s178, 2
        %s182 = sadd.s32 %s180, %s181
        %s183 = smul.addr %s182, 4
        %s184 = scalar_lea.vmem %s2, %s183
        %s185 = smul.u32 2, %s18
      $region28: #{a_call__.5} parent=23 // pred_fallthru
        _
      // Predicated region
      $region29: #{a_call__.5} parent=23 // pred_check
        %p186 = pneg %p114
      $region30: #{a_call__.5} parent=23 // pred_check_branch
        %188 = sbr.rel (%p186) target = $region32
      $region31: #{a_call__.5} parent=23 // pred_region
        %s189 = smul.u32 2, %s18
        %p190 = scmp.lt.s32.totalorder %s17, 1
        %s191 = scalar_select %p190, %s17, 1
        %p192 = scmp.lt.s32.totalorder %s189, 1
        %s193 = scalar_select %p192, %s189, 1
        %s194 = smul.addr %s191, 2
        %s195 = sadd.s32 %s193, %s194
        %s196 = smul.addr %s195, 4
        %s197 = scalar_lea.vmem %s3, %s196
        %s198 = smul.u32 2, %s18
      $region32: #{a_call__.5} parent=23 // pred_fallthru
        _
    $region24: #{a_call__.5} parent=5 // pred_fallthru
      _
    %p199 = scmp.le.s32.totalorder 1, %s10
    %p200 = scmp.lt.s32.totalorder %s10, 3
    %p201 = pnand %p199, %p200
    %p202 = pneg %p201
    // Predicated region
    $region33: #{a_call__.5} parent=5 // pred_check
      _
    $region34: #{a_call__.5} parent=5 // pred_check_branch
      %204 = sbr.rel (%p201) target = $region36
    $region35: #{a_call__.5} parent=5 // pred_region
      %s205 = ssub.s32 %s10, 1
      %p206 = pneg %p43
      %p207 = pneg %p40
      %p208 = pneg %p64
      %p209 = pneg %p61
      %s210 = smul.u32 2, %s20
      %p211 = scmp.lt.s32.totalorder %s19, 1
      %s212 = scalar_select %p211, %s19, 1
      %p213 = scmp.lt.s32.totalorder %s210, 1
      %s214 = scalar_select %p213, %s210, 1
      %s215 = smul.addr %s212, 2
      %s216 = sadd.s32 %s214, %s215
      %s217 = smul.addr %s216, 4
      %s218 = scalar_lea.vmem %s2, %s217
      %p219 = pneg %p92
      %p220 = pneg %p89
      %s221 = smul.u32 2, %s20
      %p222 = scmp.lt.s32.totalorder %s19, 1
      %s223 = scalar_select %p222, %s19, 1
      %p224 = scmp.lt.s32.totalorder %s221, 1
      %s225 = scalar_select %p224, %s221, 1
      %s226 = smul.addr %s223, 2
      %s227 = sadd.s32 %s225, %s226
      %s228 = smul.addr %s227, 4
      %s229 = scalar_lea.vmem %s3, %s228
      %p230 = pneg %p120
      %p231 = pneg %p117
      %p232 = pneg %p148
      %p233 = pneg %p145
      %s234 = smul.u32 2, %s20
      %p235 = scmp.lt.s32.totalorder %s19, 1
      %s236 = scalar_select %p235, %s19, 1
      %p237 = scmp.lt.s32.totalorder %s234, 1
      %s238 = scalar_select %p237, %s234, 1
      %s239 = smul.addr %s236, 2
      %s240 = sadd.s32 %s238, %s239
      %s241 = smul.addr %s240, 4
      %s242 = scalar_lea.vmem %s4, %s241
      %s243 = smul.u32 2, %s20
      %p244 = scmp.lt.s32.totalorder %s19, 1
      %s245 = scalar_select %p244, %s19, 1
      %p246 = scmp.lt.s32.totalorder %s243, 1
      %s247 = scalar_select %p246, %s243, 1
      %s248 = smul.addr %s245, 2
      %s249 = sadd.s32 %s247, %s248
      %s250 = smul.addr %s249, 4
      %s251 = scalar_lea.vmem %s2, %s250
      %s252 = smul.u32 2, %s20
      %s253 = smul.u32 2, %s20
      %p254 = scmp.lt.s32.totalorder %s19, 1
      %s255 = scalar_select %p254, %s19, 1
      %p256 = scmp.lt.s32.totalorder %s253, 1
      %s257 = scalar_select %p256, %s253, 1
      %s258 = smul.addr %s255, 2
      %s259 = sadd.s32 %s257, %s258
      %s260 = smul.addr %s259, 4
      %s261 = scalar_lea.vmem %s3, %s260
      %s262 = smul.u32 2, %s20
      %s263 = smul.u32 2, %s20
      %p264 = scmp.lt.s32.totalorder %s19, 1
      %s265 = scalar_select %p264, %s19, 1
      %p266 = scmp.lt.s32.totalorder %s263, 1
      %s267 = scalar_select %p266, %s263, 1
      %s268 = smul.addr %s265, 2
      %s269 = sadd.s32 %s267, %s268
      %s270 = smul.addr %s269, 4
      %s271 = scalar_lea.vmem %s4, %s270
      %s272 = smul.u32 2, %s20
      %v273 = vld [vmem:[%s0] sm:$0xf]
      %v274 = vld [vmem:[%s261] sm:$0xff]
      %v275 = vld [vmem:[%s1] sm:$0xf]
      %277 = vset.pattern.permute.xlu0 0
      %278 = vperm.xlu0 %277, %v275
      %v279 = vpop.permute.xlu0 %278
      %v282 = vcombine.high %v274, %v274
      %vm283 = vcmask 31744
      %v285 = vsel %vm283, %v273, 0
      %vm287 = vcmask 1043456
      %v288 = vsel %vm287, %v274, 0
      %v290 = vsel %vm287, %v282, 0
      %292 = vmatprep.subr.mxu0 %v290
      %293 = vmatpush1.msra.mxu0 %v288
      %294 = vmatprep.subr.mxu0 0.0
      %295 = vmatpush1.msra.mxu0 0.0
      %296 = vmatprep.subr.mxu0 0.0
      %297 = vmatpush1.msra.mxu0 0.0
      %298 = vmatprep.subr.mxu0 0.0
      %299 = vmatpush1.msra.mxu0 0.0
      %300 = vmatprep.subr.mxu0 0.0
      %301 = vmatpush1.msra.mxu0 0.0
      %302 = vmatprep.subr.mxu0 0.0
      %303 = vmatpush1.msra.mxu0 0.0
      %304 = vmatprep.subr.mxu0 0.0
      %305 = vmatpush1.msra.mxu0 0.0
      %306 = vmatprep.subr.mxu0 0.0
      %307 = vmatpush1.msra.mxu0 0.0
      %308 = vmatprep.subr.mxu0 0.0
      %309 = vmatpush1.msra.mxu0 0.0
      %310 = vmatprep.subr.mxu0 0.0
      %311 = vmatpush1.msra.mxu0 0.0
      %312 = vmatprep.subr.mxu0 0.0
      %313 = vmatpush1.msra.mxu0 0.0
      %314 = vmatprep.subr.mxu0 0.0
      %315 = vmatpush1.msra.mxu0 0.0
      %316 = vmatprep.subr.mxu0 0.0
      %317 = vmatpush1.msra.mxu0 0.0
      %318 = vmatprep.subr.mxu0 0.0
      %319 = vmatpush1.msra.mxu0 0.0
      %320 = vmatprep.subr.mxu0 0.0
      %321 = vmatpush1.msra.mxu0 0.0
      %322 = vmatprep.subr.mxu0 0.0
      %323 = vmatpush1.msra.mxu0 0.0
      %324 = vmatprep.subr.mxu0 0.0
      %325 = vmatpush1.msra.mxu0 0.0
      %326 = vmatprep.subr.mxu0 0.0
      %327 = vmatpush1.msra.mxu0 0.0
      %328 = vmatprep.subr.mxu0 0.0
      %329 = vmatpush1.msra.mxu0 0.0
      %330 = vmatprep.subr.mxu0 0.0
      %331 = vmatpush1.msra.mxu0 0.0
      %332 = vmatprep.subr.mxu0 0.0
      %333 = vmatpush1.msra.mxu0 0.0
      %334 = vmatprep.subr.mxu0 0.0
      %335 = vmatpush1.msra.mxu0 0.0
      %336 = vmatprep.subr.mxu0 0.0
      %337 = vmatpush1.msra.mxu0 0.0
      %338 = vmatprep.subr.mxu0 0.0
      %339 = vmatpush1.msra.mxu0 0.0
      %340 = vmatprep.subr.mxu0 0.0
      %341 = vmatpush1.msra.mxu0 0.0
      %342 = vmatprep.subr.mxu0 0.0
      %343 = vmatpush1.msra.mxu0 0.0
      %344 = vmatprep.subr.mxu0 0.0
      %345 = vmatpush1.msra.mxu0 0.0
      %346 = vmatprep.subr.mxu0 0.0
      %347 = vmatpush1.msra.mxu0 0.0
      %348 = vmatprep.subr.mxu0 0.0
      %349 = vmatpush1.msra.mxu0 0.0
      %350 = vmatprep.subr.mxu0 0.0
      %351 = vmatpush1.msra.mxu0 0.0
      %352 = vmatprep.subr.mxu0 0.0
      %353 = vmatpush1.msra.mxu0 0.0
      %354 = vmatprep.subr.mxu0 0.0
      %355 = vmatpush1.msra.mxu0 0.0
      %356 = vmatprep.mubr.f32.mxu0 0.0
      %357 = vmatmul.mubr.f32.gmra.mrb[0].mxu0 %v285
      %v358 = vpop.f32.mrb[0].mxu0
      %v359 = vadd.f32 %v279, %v358
      %v360 = vpop.f32.mrb[0].mxu0
      %v361 = vadd.f32 %v279, %v360
      %362 = vdwg.mxu0
      %v363 = vld [vmem:[%s251] sm:$0xff]
      %v365 = vcombine.high %v363, %v363
      %v367 = vadd.f32 %v359, %v363
      %v368 = vadd.f32 %v361, %v365
      %v371 = vcombine.low %v367, %v368
      %373 = vst [vmem:[%s271] sm:$0xff] %v371
      %s374 = smul.u32 2, %s20
      %p375 = scmp.lt.s32.totalorder %s19, 1
      %s376 = scalar_select %p375, %s19, 1
      %p377 = scmp.lt.s32.totalorder %s374, 1
      %s378 = scalar_select %p377, %s374, 1
      %s379 = smul.addr %s376, 2
      %s380 = sadd.s32 %s378, %s379
      %s381 = smul.addr %s380, 4
      %s382 = scalar_lea.vmem %s4, %s381
      // Predicated region
      $region37: #{a_call__.5} parent=35 // pred_check
        %p383 = pneg %p145
      $region38: #{a_call__.5} parent=35 // pred_check_branch
        %385 = sbr.rel (%p383) target = $region40
      $region39: #{a_call__.5} parent=35 // pred_region
        %s386 = smul.u32 2, %s20
      $region40: #{a_call__.5} parent=35 // pred_fallthru
        _
    $region36: #{a_call__.5} parent=5 // pred_fallthru
      _
    %p387 = scmp.le.s32.totalorder 2, %s10
    // Predicated region
    $region41: #{a_call__.5} parent=5 // pred_check
      %p388 = pneg %p387
    $region42: #{a_call__.5} parent=5 // pred_check_branch
      %390 = sbr.rel (%p388) target = $region44
    $region43: #{a_call__.5} parent=5 // pred_region
      %s391 = ssub.s32 %s10, 2
      // Predicated region
      $region45: #{a_call__.5} parent=43 // pred_check
        %p392 = pneg %p151
      $region46: #{a_call__.5} parent=43 // pred_check_branch
        %394 = sbr.rel (%p392) target = $region48
      $region47: #{a_call__.5} parent=43 // pred_region
        %s395 = smul.u32 2, %s22
        %p396 = scmp.lt.s32.totalorder %s21, 1
        %s397 = scalar_select %p396, %s21, 1
        %p398 = scmp.lt.s32.totalorder %s395, 1
        %s399 = scalar_select %p398, %s395, 1
        %s400 = smul.addr %s397, 2
        %s401 = sadd.s32 %s399, %s400
        %s402 = smul.addr %s401, 4
        %s403 = scalar_lea.vmem %s4, %s402
      $region48: #{a_call__.5} parent=43 // pred_fallthru
        _
    $region44: #{a_call__.5} parent=5 // pred_fallthru
      _
  $region6: #{a_call__.5} parent=0 // loop_footer
    %s14 = sadd.s32 1, %s10
  $region7: #{a_call__.5} parent=0 // loop_footer_branch
    %9 = sbr.rel target = $region3
  $region8: #{a_call__.5} parent=0 // loop_exit
    _

</llo_original>
